<compile_context>
chip_gen: v5e
topology: v5e:2x2
jax: 0.10.0
libtpu: 0.0.40
codegen_flags: <defaults>
</compile_context>

<pallas_src>
import functools

import numpy as np
import jax
import jax.numpy as jnp
from jax.experimental import pallas as pl
from jax.experimental.pallas import tpu as pltpu

BN_EPS = 1e-5
VMEM_LIMIT = 48 * 1024 * 1024   # <= v7x physical (64 MiB), plenty on v5e/v6e


def _round_up(x, m):
    return (x + m - 1) // m * m


def _pick_tm(M):
    if M >= 4096:
        return 512
    if M >= 1024:
        return 256
    if M >= 128:
        return 128
    return max(8, _round_up(M, 8))


# --------------------------------------------------------------------------
# Full-resident-weight matmul: out = maybe_relu((x @ W) * scale + bias [+ r])
# x: (Mp, Kp) bf16, W: (Kp, Np) bf16 (constant block, fetched once),
# sb: (8, Np) f32 (row0 scale, row1 bias), out bf16.  Grid over M only.
# --------------------------------------------------------------------------
def _mm_kernel(x_ref, w_ref, sb_ref, o_ref, *, relu):
    acc = jnp.dot(x_ref[...], w_ref[...], preferred_element_type=jnp.float32)
    y = acc * sb_ref[0:1, :] + sb_ref[1:2, :]
    if relu:
        y = jnp.maximum(y, 0.0)
    o_ref[...] = y.astype(o_ref.dtype)


def _mm_res_kernel(x_ref, w_ref, sb_ref, r_ref, o_ref, *, relu):
    acc = jnp.dot(x_ref[...], w_ref[...], preferred_element_type=jnp.float32)
    y = acc * sb_ref[0:1, :] + sb_ref[1:2, :] + r_ref[...].astype(jnp.float32)
    if relu:
        y = jnp.maximum(y, 0.0)
    o_ref[...] = y.astype(o_ref.dtype)


def _mm_call(xp, wp, sbp, residp, *, tm, relu):
    Mp, Kp = xp.shape
    assert wp.shape[0] == Kp
    Np = wp.shape[1]
    grid = (Mp // tm,)
    x_spec = pl.BlockSpec((tm, Kp), lambda i: (i, 0))
    w_spec = pl.BlockSpec((Kp, Np), lambda i: (0, 0))     # resident, DMA'd once
    s_spec = pl.BlockSpec((8, Np), lambda i: (0, 0))
    if residp is None:
        kernel = functools.partial(_mm_kernel, relu=relu)
        in_specs = [x_spec, w_spec, s_spec]
        args = (xp, wp, sbp)
    else:
        kernel = functools.partial(_mm_res_kernel, relu=relu)
        in_specs = [x_spec, w_spec, s_spec,
                    pl.BlockSpec((tm, Np), lambda i: (i, 0))]
        args = (xp, wp, sbp, residp)
    return pl.pallas_call(
        kernel,
        out_shape=jax.ShapeDtypeStruct((Mp, Np), jnp.bfloat16),
        grid_spec=pltpu.PrefetchScalarGridSpec(
            num_scalar_prefetch=0,
            grid=grid,
            in_specs=in_specs,
            out_specs=pl.BlockSpec((tm, Np), lambda i: (i, 0)),
        ),
        compiler_params=pltpu.CompilerParams(
            dimension_semantics=("parallel",),
            vmem_limit_bytes=VMEM_LIMIT),
    )(*args)


# --------------------------------------------------------------------------
# 1x1 conv (optionally strided, optional fused residual add + ReLU)
# x is NHWC bf16 with padded channels == wm.shape[0]; output keeps padded cout.
# --------------------------------------------------------------------------
@functools.partial(jax.jit, static_argnames=("stride", "relu"))
def conv1x1(x, wm, sb, residual=None, *, stride=1, relu=True):
    if stride > 1:
        x = x[:, ::stride, ::stride, :]
    N, H, W, Cp = x.shape
    assert Cp == wm.shape[0]
    M = N * H * W
    tm = _pick_tm(M)
    Mp = _round_up(M, tm)
    xf = x.reshape(M, Cp)
    if Mp != M:
        xf = jnp.pad(xf, ((0, Mp - M), (0, 0)))
    rf = None
    if residual is not None:
        rf = residual.reshape(M, residual.shape[-1])
        if Mp != M:
            rf = jnp.pad(rf, ((0, Mp - M), (0, 0)))
    out = _mm_call(xf, wm, sb, rf, tm=tm, relu=relu)
    if Mp != M:
        out = out[:M]
    return out.reshape(N, H, W, wm.shape[1])


# --------------------------------------------------------------------------
# Strided / 7x7 convs (stem + the single 3x3/s2): bf16 im2col + resident-weight
# matmul.  Only used where stride > 1.
# --------------------------------------------------------------------------
def _im2col(x, kh, kw, stride, padding, dilation):
    N, H, W, C = x.shape
    Ho = (H + 2 * padding - dilation * (kh - 1) - 1) // stride + 1
    Wo = (W + 2 * padding - dilation * (kw - 1) - 1) // stride + 1
    xp = jnp.pad(x, ((0, 0), (padding, padding), (padding, padding), (0, 0)))
    cols = []
    for i in range(kh):
        r0 = i * dilation
        for j in range(kw):
            c0 = j * dilation
            cols.append(xp[:, r0:r0 + stride * (Ho - 1) + 1:stride,
                           c0:c0 + stride * (Wo - 1) + 1:stride, :])
    patches = jnp.stack(cols, axis=3)                 # (N, Ho, Wo, kh*kw, C)
    return patches.reshape(N * Ho * Wo, kh * kw * C), (N, Ho, Wo)


@functools.partial(jax.jit, static_argnames=("kh", "kw", "stride", "padding",
                                             "dilation", "relu"))
def conv_im2col(x, wm, sb, *, kh, kw, stride, padding, dilation, relu):
    patches, (N, Ho, Wo) = _im2col(x.astype(jnp.bfloat16), kh, kw,
                                   stride, padding, dilation)
    M, K = patches.shape
    Kp, Np = wm.shape
    assert K <= Kp
    tm = _pick_tm(M)
    Mp = _round_up(M, tm)
    xp = jnp.pad(patches, ((0, Mp - M), (0, Kp - K)))
    out = _mm_call(xp, wm, sb, None, tm=tm, relu=relu)
    if Mp != M:
        out = out[:M]
    return out.reshape(N, Ho, Wo, Np)


# --------------------------------------------------------------------------
# kxk stride-1 ('same') conv, tap-decomposed, resident weight.
# grid = (H,).  Per step: kh shifted padded input rows (one BlockSpec each),
# static kw column taps, all taps/cin/cout in one kernel invocation.
# --------------------------------------------------------------------------
def _make_tap_kernel(kh, kw, dil, wo, nimg, relu):
    def kernel(*refs):
        x_refs = refs[:kh]                       # each (N, Wp, Cinp) bf16
        w_ref = refs[kh]                         # (kh, kw, Cinp, Coutp) bf16
        sb_ref = refs[kh + 1]                    # (8, Coutp) f32
        o_ref = refs[kh + 2]                     # (N, W, Coutp) bf16
        accs = [None] * nimg
        # ki/kj outermost so the pushed (Cin, Cout) RHS is reused across the
        # batch (cheap win on v5e's 128x128 MXU).
        for ki in range(kh):
            for kj in range(kw):
                wk = w_ref[ki, kj]               # (Cinp, Coutp), static taps
                for n in range(nimg):
                    xs = x_refs[ki][n, kj * dil:kj * dil + wo, :]   # (wo, Cinp)
                    t = jnp.dot(xs, wk, preferred_element_type=jnp.float32)
                    accs[n] = t if accs[n] is None else accs[n] + t
        scale = sb_ref[0:1, :]
        bias = sb_ref[1:2, :]
        for n in range(nimg):
            y = accs[n] * scale + bias
            if relu:
                y = jnp.maximum(y, 0.0)
            o_ref[n] = y.astype(o_ref.dtype)
    return kernel


@functools.partial(jax.jit, static_argnames=("dilation", "relu"))
def conv_kxk_s1(x, wt, sb, *, dilation=1, relu=True):
    """kxk stride-1 conv (padding = dilation*(k-1)//2) + folded BN (+ReLU)."""
    N, H, W, Cin = x.shape
    kh, kw, Cinp, Coutp = wt.shape
    assert Cin == Cinp
    d = dilation
    pad = d * (kh - 1) // 2
    xp = jnp.pad(x, ((0, 0), (pad, pad), (pad, pad), (0, 0)))
    Wp = W + 2 * pad

    kernel = _make_tap_kernel(kh, kw, d, W, N, relu)
    x_specs = [
        pl.BlockSpec((N, None, Wp, Cinp),
                     (lambda ho, _ki=ki, _d=d: (0, ho + _ki * _d, 0, 0)))
        for ki in range(kh)
    ]
    out = pl.pallas_call(
        kernel,
        out_shape=jax.ShapeDtypeStruct((N, H, W, Coutp), jnp.bfloat16),
        grid_spec=pltpu.PrefetchScalarGridSpec(
            num_scalar_prefetch=0,
            grid=(H,),
            in_specs=x_specs + [
                pl.BlockSpec((kh, kw, Cinp, Coutp), lambda ho: (0, 0, 0, 0)),
                pl.BlockSpec((8, Coutp), lambda ho: (0, 0)),
            ],
            out_specs=pl.BlockSpec((N, None, W, Coutp),
                                   lambda ho: (0, ho, 0, 0)),
        ),
        compiler_params=pltpu.CompilerParams(
            dimension_semantics=("parallel",),
            vmem_limit_bytes=VMEM_LIMIT),
    )(*([xp] * kh + [wt, sb]))
    return out


# --------------------------------------------------------------------------
# MaxPool2d(kernel=3, stride=2, padding=1) — per-output-row, bf16.
# TODO(synk): multi-output-row blocking to amortize per-step overhead.
# --------------------------------------------------------------------------
def _maxpool_kernel(x0_ref, x1_ref, x2_ref, o_ref, *, wo):
    out = None
    for ref in (x0_ref, x1_ref, x2_ref):
        for u in range(3):
            v = ref[pl.ds(u, wo, 2), :]            # stride-2 window columns
            out = v if out is None else jnp.maximum(out, v)
    o_ref[...] = out


@jax.jit
def maxpool_3x3_s2_p1(x):
    N, H, W, C = x.shape
    Ho = (H - 1) // 2 + 1
    Wo = (W - 1) // 2 + 1
    # Input is post-ReLU (>= 0); a large negative pad is equivalent to -inf
    # (-1e30 is representable in bf16).
    xp = jnp.pad(x, ((0, 0), (1, 1), (1, 1), (0, 0)), constant_values=-1e30)
    kernel = functools.partial(_maxpool_kernel, wo=Wo)
    return pl.pallas_call(
        kernel,
        out_shape=jax.ShapeDtypeStruct((N, Ho, Wo, C), x.dtype),
        grid_spec=pltpu.PrefetchScalarGridSpec(
            num_scalar_prefetch=0,
            grid=(N, Ho),
            in_specs=[
                pl.BlockSpec((None, None, W + 2, C),
                             lambda n, ho: (n, 2 * ho, 0, 0)),
                pl.BlockSpec((None, None, W + 2, C),
                             lambda n, ho: (n, 2 * ho + 1, 0, 0)),
                pl.BlockSpec((None, None, W + 2, C),
                             lambda n, ho: (n, 2 * ho + 2, 0, 0)),
            ],
            out_specs=pl.BlockSpec((None, None, Wo, C),
                                   lambda n, ho: (n, ho, 0, 0)),
        ),
        compiler_params=pltpu.CompilerParams(
            dimension_semantics=("parallel", "parallel")),
    )(xp, xp, xp)


# --------------------------------------------------------------------------
# AdaptiveAvgPool2d(1) — gridded reduction, f32 accumulation of bf16 input
# --------------------------------------------------------------------------
def _gap_kernel(x_ref, o_ref, acc_ref, *, inv_hw):
    r = pl.program_id(1)

    @pl.when(r == 0)
    def _():
        acc_ref[...] = jnp.zeros_like(acc_ref)

    acc_ref[...] += jnp.sum(x_ref[...].astype(jnp.float32), axis=0,
                            keepdims=True)

    @pl.when(r == pl.num_programs(1) - 1)
    def _():
        o_ref[...] = (acc_ref[...] * inv_hw).astype(o_ref.dtype)


@jax.jit
def global_avg_pool(x):
    N, H, W, C = x.shape
    HW = H * W
    tr = min(512, _round_up(HW, 8))
    HWp = _round_up(HW, tr)
    xf = jnp.pad(x.reshape(N, HW, C), ((0, 0), (0, HWp - HW), (0, 0)))
    out = pl.pallas_call(
        functools.partial(_gap_kernel, inv_hw=1.0 / HW),
        out_shape=jax.ShapeDtypeStruct((N, 1, C), jnp.bfloat16),
        grid_spec=pltpu.PrefetchScalarGridSpec(
            num_scalar_prefetch=0,
            grid=(N, HWp // tr),
            in_specs=[pl.BlockSpec((None, tr, C), lambda n, r: (n, r, 0))],
            out_specs=pl.BlockSpec((None, 1, C), lambda n, r: (n, 0, 0)),
            scratch_shapes=[pltpu.VMEM((1, C), jnp.float32)],
        ),
        compiler_params=pltpu.CompilerParams(
            dimension_semantics=("parallel", "arbitrary")),
    )(xf)
    return out.reshape(N, 1, 1, C)


# --------------------------------------------------------------------------
# Bilinear resize (align_corners=False) — per-image Pallas kernel, separable
# W-then-H pass on the VPU, channels stay on the lane axis (no HBM transposes).
# TODO(synk): tile Ho / exploit the 2-tap sparsity for large real-scale outputs.
# --------------------------------------------------------------------------
def _interp_matrix(dst, src):
    Wm = np.zeros((dst, src), np.float32)
    if src == 1:
        Wm[:, 0] = 1.0
        return Wm
    scale = src / dst
    for o in range(dst):
        s = max((o + 0.5) * scale - 0.5, 0.0)
        i0 = min(int(np.floor(s)), src - 1)
        i1 = min(i0 + 1, src - 1)
        l1 = s - i0
        Wm[o, i0] += 1.0 - l1
        Wm[o, i1] += l1
    return Wm


def _bilinear_kernel(ah_ref, aw_ref, x_ref, o_ref):
    hi, wi = x_ref.shape[1], x_ref.shape[2]
    ho = o_ref.shape[1]
    # W pass: rows[h][p, c] = sum_w aw[p, w] * x[h, w, c]
    rows = []
    for h in range(hi):
        acc = None
        for w in range(wi):
            term = aw_ref[:, w:w + 1] * x_ref[0, h, w:w + 1, :].astype(
                jnp.float32)                                      # (Wo, C)
            acc = term if acc is None else acc + term
        rows.append(acc)
    # H pass: out[o, p, c] = sum_h ah[o, h] * rows[h][p, c]
    for o in range(ho):
        acc = None
        for h in range(hi):
            term = ah_ref[o:o + 1, h:h + 1] * rows[h]
            acc = term if acc is None else acc + term
        o_ref[0, o] = acc.astype(o_ref.dtype)


@functools.partial(jax.jit, static_argnames=("Ho", "Wo"))
def bilinear_resize(x, *, Ho, Wo):
    N, Hi, Wi, C = x.shape
    if Hi == 1 and Wi == 1:            # bilinear of a 1x1 source is a broadcast
        return jnp.broadcast_to(x, (N, Ho, Wo, C))
    Ah = jnp.asarray(_interp_matrix(Ho, Hi))          # (Ho, Hi)
    Aw = jnp.asarray(_interp_matrix(Wo, Wi))          # (Wo, Wi)
    return pl.pallas_call(
        _bilinear_kernel,
        out_shape=jax.ShapeDtypeStruct((N, Ho, Wo, C), jnp.float32),
        grid_spec=pltpu.PrefetchScalarGridSpec(
            num_scalar_prefetch=0,
            grid=(N,),
            in_specs=[
                pl.BlockSpec((Ho, Hi), lambda n: (0, 0)),
                pl.BlockSpec((Wo, Wi), lambda n: (0, 0)),
                pl.BlockSpec((1, Hi, Wi, C), lambda n: (n, 0, 0, 0)),
            ],
            out_specs=pl.BlockSpec((1, Ho, Wo, C), lambda n: (n, 0, 0, 0)),
        ),
        compiler_params=pltpu.CompilerParams(
            dimension_semantics=("parallel",)),
    )(Ah, Aw, x)


# --------------------------------------------------------------------------
# Deterministic synthetic parameters (deeplabv3_resnet50 shapes), pre-padded
# and pre-cast to bf16; eval BN folded into (scale, bias).
# --------------------------------------------------------------------------
def _pack_conv(w, scale, bias, *, tap):
    kh, kw, cin, cout = w.shape
    coutp = _round_up(cout, 128)
    sb = np.zeros((8, coutp), np.float32)
    sb[0, :cout] = scale
    sb[1, :cout] = bias
    if tap:
        cinp = _round_up(cin, 128)
        wt = np.zeros((kh, kw, cinp, coutp), np.float32)
        wt[:, :, :cin, :cout] = w
        return dict(kind="tap", w=jnp.asarray(wt).astype(jnp.bfloat16),
                    sb=jnp.asarray(sb), cout=cout, kh=kh, kw=kw)
    K = kh * kw * cin
    Kp = _round_up(K, 128)
    wm = np.zeros((Kp, coutp), np.float32)
    wm[:K, :cout] = w.reshape(K, cout)
    return dict(kind="mm", w=jnp.asarray(wm).astype(jnp.bfloat16),
                sb=jnp.asarray(sb), cout=cout, kh=kh, kw=kw)


def _make_conv_bn(rng, kh, kw, cin, cout, *, tap):
    std = np.sqrt(2.0 / (kh * kw * cin))
    w = (rng.standard_normal((kh, kw, cin, cout)) * std).astype(np.float32)
    gamma = (1.0 + 0.1 * rng.standard_normal(cout)).astype(np.float32)
    beta = (0.05 * rng.standard_normal(cout)).astype(np.float32)
    mean = (0.05 * rng.standard_normal(cout)).astype(np.float32)
    var = (1.0 + 0.1 * np.abs(rng.standard_normal(cout))).astype(np.float32)
    scale = gamma / np.sqrt(var + BN_EPS)
    bias = beta - mean * scale
    return _pack_conv(w, scale, bias, tap=tap)


def _make_bottleneck(rng, cin, width, stride, dilation, with_down):
    p = dict(
        conv1=_make_conv_bn(rng, 1, 1, cin, width, tap=False),
        conv2=_make_conv_bn(rng, 3, 3, width, width, tap=(stride == 1)),
        conv3=_make_conv_bn(rng, 1, 1, width, width * 4, tap=False),
        stride=stride, dilation=dilation,
    )
    if with_down:
        p["down"] = _make_conv_bn(rng, 1, 1, cin, width * 4, tap=False)
    return p


def build_params(num_classes, seed=0):
    rng = np.random.RandomState(seed)
    P = {"conv1": _make_conv_bn(rng, 7, 7, 3, 64, tap=False)}
    state = {"dilation": 1, "inplanes": 64}

    def make_layer(width, blocks, stride, dilate):
        prev_dil = state["dilation"]
        s = stride
        if dilate:                    # replace_stride_with_dilation
            state["dilation"] *= s
            s = 1
        blks = []
        with_down = (s != 1) or (state["inplanes"] != width * 4)
        blks.append(_make_bottleneck(rng, state["inplanes"], width, s,
                                     prev_dil, with_down))
        state["inplanes"] = width * 4
        for _ in range(1, blocks):
            blks.append(_make_bottleneck(rng, state["inplanes"], width, 1,
                                         state["dilation"], False))
        return blks

    # ResNet-50, replace_stride_with_dilation = [False, True, True]
    P["layer1"] = make_layer(64, 3, 1, False)
    P["layer2"] = make_layer(128, 4, 2, False)
    P["layer3"] = make_layer(256, 6, 2, True)
    P["layer4"] = make_layer(512, 3, 2, True)

    # DeepLabHead: ASPP(2048, [12, 24, 36]) -> 3x3 conv -> 1x1 classifier
    P["aspp0"] = _make_conv_bn(rng, 1, 1, 2048, 256, tap=False)
    P["aspp1"] = _make_conv_bn(rng, 3, 3, 2048, 256, tap=True)
    P["aspp2"] = _make_conv_bn(rng, 3, 3, 2048, 256, tap=True)
    P["aspp3"] = _make_conv_bn(rng, 3, 3, 2048, 256, tap=True)
    P["aspp_pool"] = _make_conv_bn(rng, 1, 1, 2048, 256, tap=False)
    P["aspp_project"] = _make_conv_bn(rng, 1, 1, 5 * 256, 256, tap=False)
    P["head_conv"] = _make_conv_bn(rng, 3, 3, 256, 256, tap=True)
    std = np.sqrt(2.0 / 256)
    cw = (rng.standard_normal((1, 1, 256, num_classes)) * std).astype(np.float32)
    cb = (0.01 * rng.standard_normal(num_classes)).astype(np.float32)
    P["classifier"] = _pack_conv(cw, np.ones((num_classes,), np.float32), cb,
                                 tap=False)
    return P


# --------------------------------------------------------------------------
# Forward pass
# --------------------------------------------------------------------------
def apply_conv(x, p, *, stride=1, padding=0, dilation=1, relu=True,
               residual=None):
    if p["kind"] == "tap":
        assert stride == 1 and residual is None
        assert padding == dilation * (p["kh"] - 1) // 2
        return conv_kxk_s1(x, p["w"], p["sb"], dilation=dilation, relu=relu)
    if p["kh"] == 1 and p["kw"] == 1:
        return conv1x1(x, p["w"], p["sb"], residual, stride=stride, relu=relu)
    assert residual is None
    return conv_im2col(x, p["w"], p["sb"], kh=p["kh"], kw=p["kw"],
                       stride=stride, padding=padding, dilation=dilation,
                       relu=relu)


def _bottleneck_forward(x, p):
    out = apply_conv(x, p["conv1"], relu=True)
    out = apply_conv(out, p["conv2"], stride=p["stride"],
                     padding=p["dilation"], dilation=p["dilation"], relu=True)
    if "down" in p:
        identity = apply_conv(x, p["down"], stride=p["stride"], relu=False)
    else:
        identity = x
    # residual add + ReLU fused into the conv3 matmul epilogue (bf16 residual)
    return apply_conv(out, p["conv3"], relu=True, residual=identity)


def wss_deeplabv3_forward(params, x_nchw):
    """Returns pred_mask = base(x)['out'] (NCHW logits at input resolution)."""
    x = jnp.transpose(x_nchw, (0, 2, 3, 1)).astype(jnp.float32)  # NCHW -> NHWC
    N, H, W, _ = x.shape

    # ResNet-50 backbone (output stride 8); activations bf16, channels padded.
    x = apply_conv(x, params["conv1"], stride=2, padding=3, relu=True)
    x = maxpool_3x3_s2_p1(x)
    for name in ("layer1", "layer2", "layer3", "layer4"):
        for blk in params[name]:
            x = _bottleneck_forward(x, blk)
    feat = x
    Hi, Wi = int(feat.shape[1]), int(feat.shape[2])

    # ASPP
    b0 = apply_conv(feat, params["aspp0"], relu=True)
    b1 = apply_conv(feat, params["aspp1"], padding=12, dilation=12, relu=True)
    b2 = apply_conv(feat, params["aspp2"], padding=24, dilation=24, relu=True)
    b3 = apply_conv(feat, params["aspp3"], padding=36, dilation=36, relu=True)
    gp = global_avg_pool(feat)
    gp = apply_conv(gp, params["aspp_pool"], relu=True)
    gp = bilinear_resize(gp, Ho=Hi, Wo=Wi)              # 1x1 source -> broadcast
    cat = jnp.concatenate([b0, b1, b2, b3, gp], axis=-1)
    y = apply_conv(cat, params["aspp_project"], relu=True)
    # Dropout(0.5): identity in eval mode.

    # Head
    y = apply_conv(y, params["head_conv"], padding=1, dilation=1, relu=True)
    y = apply_conv(y, params["classifier"], relu=False)

    # Upsample logits to input resolution, bilinear, align_corners=False.
    y = bilinear_resize(y, Ho=H, Wo=W)                  # f32
    y = y[..., :params["classifier"]["cout"]]           # drop channel padding
    return jnp.transpose(y, (0, 3, 1, 2))               # back to NCHW


# --------------------------------------------------------------------------
if __name__ == "__main__":
    num_classes = 21
    params = build_params(num_classes, seed=0)

    key = jax.random.PRNGKey(0)
    x = jax.random.normal(key, (2, 3, 16, 16), jnp.float32)   # NCHW input

    pred_mask = wss_deeplabv3_forward(params, x)
    pred_mask = jax.block_until_ready(pred_mask)

    assert pred_mask.shape == (2, num_classes, 16, 16), pred_mask.shape
    assert bool(jnp.all(jnp.isfinite(pred_mask)))
    print("KERNEL_OK")
</pallas_src>

<mosaic_0001>
module attributes {stable_mosaic.version = 11 : i64} {
  func.func @_mm_kernel(%arg0: i32, %arg1: memref<128x256xbf16, #tpu.memory_space<vmem>>, %arg2: memref<256x128xbf16, #tpu.memory_space<vmem>>, %arg3: memref<8x128xf32, #tpu.memory_space<vmem>>, %arg4: memref<128x128xbf16, #tpu.memory_space<vmem>>) attributes {dimension_semantics = [#tpu.dimension_semantics<parallel>], iteration_bounds = array<i64: 1>, scalar_prefetch = 0 : i64, scratch_operands = 0 : i64, tpu.core_type = #tpu.core_type<tc>, window_params = [{transform_indices = @transform_0, window_bounds = array<i64: 128, 256>}, {pipeline_mode = #tpu.pipeline_mode<synchronous>, transform_indices = @transform_1, window_bounds = array<i64: 256, 128>}, {pipeline_mode = #tpu.pipeline_mode<synchronous>, transform_indices = @transform_2, window_bounds = array<i64: 8, 128>}, {transform_indices = @transform_3, window_bounds = array<i64: 128, 128>}]} {
    %c0 = arith.constant 0 : index
    %c0_0 = arith.constant 0 : index
    %0 = vector.load %arg1[%c0, %c0_0] : memref<128x256xbf16, #tpu.memory_space<vmem>>, vector<128x256xbf16>
    %c0_1 = arith.constant 0 : index
    %c0_2 = arith.constant 0 : index
    %1 = vector.load %arg2[%c0_1, %c0_2] : memref<256x128xbf16, #tpu.memory_space<vmem>>, vector<256x128xbf16>
    %cst = arith.constant dense<0.000000e+00> : vector<128x128xf32>
    %2 = tpu.matmul %0, %1, %cst {dimension_numbers = #tpu.dot_dimension_numbers<[1], [0], [0], [1], [0, 0, 1, 1], [], []>} : vector<128x256xbf16>, vector<256x128xbf16>, vector<128x128xf32> -> vector<128x128xf32>
    %c0_3 = arith.constant 0 : index
    %c0_4 = arith.constant 0 : index
    %3 = vector.load %arg3[%c0_3, %c0_4] : memref<8x128xf32, #tpu.memory_space<vmem>>, vector<1x128xf32>
    %4 = vector.broadcast %3 : vector<1x128xf32> to vector<128x128xf32>
    %5 = arith.mulf %2, %4 : vector<128x128xf32>
    %c1 = arith.constant 1 : index
    %c0_5 = arith.constant 0 : index
    %6 = vector.load %arg3[%c1, %c0_5] : memref<8x128xf32, #tpu.memory_space<vmem>>, vector<1x128xf32>
    %7 = vector.broadcast %6 : vector<1x128xf32> to vector<128x128xf32>
    %8 = arith.addf %5, %7 : vector<128x128xf32>
    %cst_6 = arith.constant 0.000000e+00 : f32
    %9 = vector.broadcast %cst_6 : f32 to vector<128x128xf32>
    %10 = arith.maximumf %8, %9 : vector<128x128xf32>
    %11 = arith.truncf %10 : vector<128x128xf32> to vector<128x128xbf16>
    %c0_7 = arith.constant 0 : index
    %c0_8 = arith.constant 0 : index
    %12 = vector.load %arg4[%c0_7, %c0_8] : memref<128x128xbf16, #tpu.memory_space<vmem>>, vector<128x128xbf16>
    tpu.vector_store %arg4[%c0_7, %c0_8], %11 {strides = array<i32>} : memref<128x128xbf16, #tpu.memory_space<vmem>>, vector<128x128xbf16>,
    return
  }
  func.func @transform_0(%arg0: i32) -> (i32, i32) {
    %c0_i32 = arith.constant 0 : i32
    %c0_i32_0 = arith.constant 0 : i32
    return %arg0, %c0_i32 : i32, i32
  }
  func.func @transform_1(%arg0: i32) -> (i32, i32) {
    %c0_i32 = arith.constant 0 : i32
    %c0_i32_0 = arith.constant 0 : i32
    %c0_i32_1 = arith.constant 0 : i32
    return %c0_i32, %c0_i32_0 : i32, i32
  }
  func.func @transform_2(%arg0: i32) -> (i32, i32) {
    %c0_i32 = arith.constant 0 : i32
    %c0_i32_0 = arith.constant 0 : i32
    %c0_i32_1 = arith.constant 0 : i32
    return %c0_i32, %c0_i32_0 : i32, i32
  }
  func.func @transform_3(%arg0: i32) -> (i32, i32) {
    %c0_i32 = arith.constant 0 : i32
    %c0_i32_0 = arith.constant 0 : i32
    return %arg0, %c0_i32 : i32, i32
  }
}

</mosaic_0001>

<llo_original>
// kernel: conv_im2col.1
$region0: #{conv_im2col.1}
  #allocation0 [shape = 'u32[]', space=smem, size = 0x4, offset = 0x4, fixed_abs, tag = 'smem constant byte address 0x4 - core index']
  #allocation1 [shape = 'u32[72,128]{1,0:T(1,128)}', space=vmem, size = 0x9000, scoped, tag = 'internal scratch']
  %s0 = inlined_call_operand.vmem [shape: bf16[128,256], index: 0, kind: input, shape index: {}]
  %s1 = inlined_call_operand.vmem [shape: bf16[256,128], index: 1, kind: input, shape index: {}]
  %s2 = inlined_call_operand.vmem [shape: f32[8,128], index: 2, kind: input, shape index: {}]
  %s3 = inlined_call_operand.hbm [shape: bf16[128,128], index: 3, kind: output, shape index: {}]
  %s4 = sld [smem:[#allocation0]]
  $region22: #{conv_im2col.1} parent=0
    _
  %s6 = ssub.s32 1, %s4
  %s7 = scalar_select 0, %s6, %s4
  $region1: #{conv_im2col.1} parent=0
    #allocation2 [shape = 'u8[32768]{0}', space=vmem, size = 0x8000, scoped, tag = 'output window, operand 0, single buffered']
    #allocation3 [shape = 's32[1]{0}', space=sflag, size = 0x4, scoped, tag = 'scoped memory for conv_im2col.1']
    %8 = vsyncpa [#allocation3], 0
    // Predicated region
    $region2: #{conv_im2col.1} parent=1 // pred_check
      _
    $region3: #{conv_im2col.1} parent=1 // pred_check_branch
      %10 = sbr.rel (0) target = $region5
    $region4: #{conv_im2col.1} parent=1 // pred_region
      _
    $region5: #{conv_im2col.1} parent=1 // pred_fallthru
      _
    // Predicated region
    $region6: #{conv_im2col.1} parent=1 // pred_check
      _
    $region7: #{conv_im2col.1} parent=1 // pred_check_branch
      %12 = sbr.rel (0) target = $region9
    $region8: #{conv_im2col.1} parent=1 // pred_region
      _
    $region9: #{conv_im2col.1} parent=1 // pred_fallthru
      _
    // Predicated region
    $region10: #{conv_im2col.1} parent=1 // pred_check
      _
    $region11: #{conv_im2col.1} parent=1 // pred_check_branch
      %14 = sbr.rel (0) target = $region13
    $region12: #{conv_im2col.1} parent=1 // pred_region
      _
    $region13: #{conv_im2col.1} parent=1 // pred_fallthru
      _
    %v15 = vld [vmem:[%s0] sm:$0xff]
    %v16 = vld [vmem:[%s0 + $0x8] sm:$0xff]
    %v17 = vld [vmem:[%s0 + $0x10] sm:$0xff]
    %v18 = vld [vmem:[%s0 + $0x18] sm:$0xff]
    %v19 = vld [vmem:[%s0 + $0x20] sm:$0xff]
    %v20 = vld [vmem:[%s0 + $0x28] sm:$0xff]
    %v21 = vld [vmem:[%s0 + $0x30] sm:$0xff]
    %v22 = vld [vmem:[%s0 + $0x38] sm:$0xff]
    %v23 = vld [vmem:[%s0 + $0x40] sm:$0xff]
    %v24 = vld [vmem:[%s0 + $0x48] sm:$0xff]
    %v25 = vld [vmem:[%s0 + $0x50] sm:$0xff]
    %v26 = vld [vmem:[%s0 + $0x58] sm:$0xff]
    %v27 = vld [vmem:[%s0 + $0x60] sm:$0xff]
    %v28 = vld [vmem:[%s0 + $0x68] sm:$0xff]
    %v29 = vld [vmem:[%s0 + $0x70] sm:$0xff]
    %v30 = vld [vmem:[%s0 + $0x78] sm:$0xff]
    %v31 = vld [vmem:[%s1] sm:$0xf]
    %v32 = vld [vmem:[%s1 + $0x4] sm:$0xf]
    %v33 = vld [vmem:[%s1 + $0x8] sm:$0xf]
    %v34 = vld [vmem:[%s1 + $0xc] sm:$0xf]
    %v35 = vld [vmem:[%s1 + $0x10] sm:$0xf]
    %v36 = vld [vmem:[%s1 + $0x14] sm:$0xf]
    %v37 = vld [vmem:[%s1 + $0x18] sm:$0xf]
    %v38 = vld [vmem:[%s1 + $0x1c] sm:$0xf]
    %v39 = vld [vmem:[%s1 + $0x20] sm:$0xf]
    %v40 = vld [vmem:[%s1 + $0x24] sm:$0xf]
    %v41 = vld [vmem:[%s1 + $0x28] sm:$0xf]
    %v42 = vld [vmem:[%s1 + $0x2c] sm:$0xf]
    %v43 = vld [vmem:[%s1 + $0x30] sm:$0xf]
    %v44 = vld [vmem:[%s1 + $0x34] sm:$0xf]
    %v45 = vld [vmem:[%s1 + $0x38] sm:$0xf]
    %v46 = vld [vmem:[%s1 + $0x3c] sm:$0xf]
    %v47 = vld [vmem:[%s1 + $0x40] sm:$0xf]
    %v48 = vld [vmem:[%s1 + $0x44] sm:$0xf]
    %v49 = vld [vmem:[%s1 + $0x48] sm:$0xf]
    %v50 = vld [vmem:[%s1 + $0x4c] sm:$0xf]
    %v51 = vld [vmem:[%s1 + $0x50] sm:$0xf]
    %v52 = vld [vmem:[%s1 + $0x54] sm:$0xf]
    %v53 = vld [vmem:[%s1 + $0x58] sm:$0xf]
    %v54 = vld [vmem:[%s1 + $0x5c] sm:$0xf]
    %v55 = vld [vmem:[%s1 + $0x60] sm:$0xf]
    %v56 = vld [vmem:[%s1 + $0x64] sm:$0xf]
    %v57 = vld [vmem:[%s1 + $0x68] sm:$0xf]
    %v58 = vld [vmem:[%s1 + $0x6c] sm:$0xf]
    %v59 = vld [vmem:[%s1 + $0x70] sm:$0xf]
    %v60 = vld [vmem:[%s1 + $0x74] sm:$0xf]
    %v61 = vld [vmem:[%s1 + $0x78] sm:$0xf]
    %v62 = vld [vmem:[%s1 + $0x7c] sm:$0xf]
    %v79 = vunpack.c.l.b16 %v15
    %v80 = vunpack.c.h.b16 %v15
    %v81 = vunpack.c.l.b16 %v16
    %v82 = vunpack.c.h.b16 %v16
    %v83 = vunpack.c.l.b16 %v17
    %v84 = vunpack.c.h.b16 %v17
    %v85 = vunpack.c.l.b16 %v18
    %v86 = vunpack.c.h.b16 %v18
    %v87 = vunpack.c.l.b16 %v19
    %v88 = vunpack.c.h.b16 %v19
    %v89 = vunpack.c.l.b16 %v20
    %v90 = vunpack.c.h.b16 %v20
    %v91 = vunpack.c.l.b16 %v21
    %v92 = vunpack.c.h.b16 %v21
    %v93 = vunpack.c.l.b16 %v22
    %v94 = vunpack.c.h.b16 %v22
    %v95 = vunpack.c.l.b16 %v23
    %v96 = vunpack.c.h.b16 %v23
    %v97 = vunpack.c.l.b16 %v24
    %v98 = vunpack.c.h.b16 %v24
    %v99 = vunpack.c.l.b16 %v25
    %v100 = vunpack.c.h.b16 %v25
    %v101 = vunpack.c.l.b16 %v26
    %v102 = vunpack.c.h.b16 %v26
    %v103 = vunpack.c.l.b16 %v27
    %v104 = vunpack.c.h.b16 %v27
    %v105 = vunpack.c.l.b16 %v28
    %v106 = vunpack.c.h.b16 %v28
    %v107 = vunpack.c.l.b16 %v29
    %v108 = vunpack.c.h.b16 %v29
    %v109 = vunpack.c.l.b16 %v30
    %v110 = vunpack.c.h.b16 %v30
    %v111 = vpack.c.b16 %v81, %v79
    %v112 = vpack.c.b16 %v82, %v80
    %v113 = vpack.c.b16 %v85, %v83
    %v114 = vpack.c.b16 %v86, %v84
    %v115 = vpack.c.b16 %v89, %v87
    %v116 = vpack.c.b16 %v90, %v88
    %v117 = vpack.c.b16 %v93, %v91
    %v118 = vpack.c.b16 %v94, %v92
    %v119 = vpack.c.b16 %v97, %v95
    %v120 = vpack.c.b16 %v98, %v96
    %v121 = vpack.c.b16 %v101, %v99
    %v122 = vpack.c.b16 %v102, %v100
    %v123 = vpack.c.b16 %v105, %v103
    %v124 = vpack.c.b16 %v106, %v104
    %v125 = vpack.c.b16 %v109, %v107
    %v126 = vpack.c.b16 %v110, %v108
    %v175 = vunpack.c.l.b16 %v31
    %v176 = vunpack.c.l.b16 %v32
    %v177 = vunpack.c.l.b16 %v33
    %v178 = vunpack.c.l.b16 %v34
    %v179 = vunpack.c.l.b16 %v35
    %v180 = vunpack.c.l.b16 %v36
    %v181 = vunpack.c.l.b16 %v37
    %v182 = vunpack.c.l.b16 %v38
    %v183 = vunpack.c.l.b16 %v39
    %v184 = vunpack.c.l.b16 %v40
    %v185 = vunpack.c.l.b16 %v41
    %v186 = vunpack.c.l.b16 %v42
    %v187 = vunpack.c.l.b16 %v43
    %v188 = vunpack.c.l.b16 %v44
    %v189 = vunpack.c.l.b16 %v45
    %v190 = vunpack.c.l.b16 %v46
    %v191 = vunpack.c.l.b16 %v47
    %v192 = vunpack.c.l.b16 %v48
    %v193 = vunpack.c.l.b16 %v49
    %v194 = vunpack.c.l.b16 %v50
    %v195 = vunpack.c.l.b16 %v51
    %v196 = vunpack.c.l.b16 %v52
    %v197 = vunpack.c.l.b16 %v53
    %v198 = vunpack.c.l.b16 %v54
    %v199 = vunpack.c.l.b16 %v55
    %v200 = vunpack.c.l.b16 %v56
    %v201 = vunpack.c.l.b16 %v57
    %v202 = vunpack.c.l.b16 %v58
    %v203 = vunpack.c.l.b16 %v59
    %v204 = vunpack.c.l.b16 %v60
    %v205 = vunpack.c.l.b16 %v61
    %v206 = vunpack.c.l.b16 %v62
    %v207 = vpack.c.b16 %v176, %v175
    %v208 = vpack.c.b16 %v178, %v177
    %v209 = vpack.c.b16 %v180, %v179
    %v210 = vpack.c.b16 %v182, %v181
    %v211 = vpack.c.b16 %v184, %v183
    %v212 = vpack.c.b16 %v186, %v185
    %v213 = vpack.c.b16 %v188, %v187
    %v214 = vpack.c.b16 %v190, %v189
    %v215 = vpack.c.b16 %v192, %v191
    %v216 = vpack.c.b16 %v194, %v193
    %v217 = vpack.c.b16 %v196, %v195
    %v218 = vpack.c.b16 %v198, %v197
    %v219 = vpack.c.b16 %v200, %v199
    %v220 = vpack.c.b16 %v202, %v201
    %v221 = vpack.c.b16 %v204, %v203
    %v222 = vpack.c.b16 %v206, %v205
    %239 = vmatpush.bf16.msra.mxu0 %v214
    %240 = vmatpush.bf16.msra.mxu0 %v213
    %241 = vmatpush.bf16.msra.mxu0 %v212
    %242 = vmatpush.bf16.msra.mxu0 %v211
    %243 = vmatpush.bf16.msra.mxu0 %v210
    %244 = vmatpush.bf16.msra.mxu0 %v209
    %245 = vmatpush.bf16.msra.mxu0 %v208
    %246 = vmatpush.bf16.msra.mxu0 %v207
    %247 = vmatmul.bf16.gmra.mxu0 %v111
    %v248 = vpop.f32.mrf.mxu0
    %v249 = vadd.f32 0.0, %v248
    %v250 = vpop.f32.mrf.mxu0
    %v251 = vadd.f32 0.0, %v250
    %252 = vmatmul.bf16.gmra.mxu0 %v113
    %v253 = vpop.f32.mrf.mxu0
    %v254 = vadd.f32 0.0, %v253
    %v255 = vpop.f32.mrf.mxu0
    %v256 = vadd.f32 0.0, %v255
    %257 = vmatmul.bf16.gmra.mxu0 %v115
    %v258 = vpop.f32.mrf.mxu0
    %v259 = vadd.f32 0.0, %v258
    %v260 = vpop.f32.mrf.mxu0
    %v261 = vadd.f32 0.0, %v260
    %262 = vmatmul.bf16.gmra.mxu0 %v117
    %v263 = vpop.f32.mrf.mxu0
    %v264 = vadd.f32 0.0, %v263
    %v265 = vpop.f32.mrf.mxu0
    %v266 = vadd.f32 0.0, %v265
    %267 = vmatmul.bf16.gmra.mxu0 %v119
    %v268 = vpop.f32.mrf.mxu0
    %v269 = vadd.f32 0.0, %v268
    %v270 = vpop.f32.mrf.mxu0
    %v271 = vadd.f32 0.0, %v270
    %272 = vmatmul.bf16.gmra.mxu0 %v121
    %v273 = vpop.f32.mrf.mxu0
    %v274 = vadd.f32 0.0, %v273
    %v275 = vpop.f32.mrf.mxu0
    %v276 = vadd.f32 0.0, %v275
    %277 = vmatmul.bf16.gmra.mxu0 %v123
    %v278 = vpop.f32.mrf.mxu0
    %v279 = vadd.f32 0.0, %v278
    %v280 = vpop.f32.mrf.mxu0
    %v281 = vadd.f32 0.0, %v280
    %282 = vmatmul.bf16.gmra.mxu0 %v125
    %v283 = vpop.f32.mrf.mxu0
    %v284 = vadd.f32 0.0, %v283
    %v285 = vpop.f32.mrf.mxu0
    %v286 = vadd.f32 0.0, %v285
    %287 = vdwg.mxu0
    %288 = vmatpush.bf16.msra.mxu0 %v222
    %289 = vmatpush.bf16.msra.mxu0 %v221
    %290 = vmatpush.bf16.msra.mxu0 %v220
    %291 = vmatpush.bf16.msra.mxu0 %v219
    %292 = vmatpush.bf16.msra.mxu0 %v218
    %293 = vmatpush.bf16.msra.mxu0 %v217
    %294 = vmatpush.bf16.msra.mxu0 %v216
    %295 = vmatpush.bf16.msra.mxu0 %v215
    %296 = vmatmul.bf16.gmra.mxu0 %v112
    %v297 = vpop.f32.mrf.mxu0
    %v298 = vadd.f32 %v249, %v297
    %v299 = vpop.f32.mrf.mxu0
    %v300 = vadd.f32 %v251, %v299
    %301 = vmatmul.bf16.gmra.mxu0 %v114
    %v302 = vpop.f32.mrf.mxu0
    %v303 = vadd.f32 %v254, %v302
    %v304 = vpop.f32.mrf.mxu0
    %v305 = vadd.f32 %v256, %v304
    %306 = vmatmul.bf16.gmra.mxu0 %v116
    %v307 = vpop.f32.mrf.mxu0
    %v308 = vadd.f32 %v259, %v307
    %v309 = vpop.f32.mrf.mxu0
    %v310 = vadd.f32 %v261, %v309
    %311 = vmatmul.bf16.gmra.mxu0 %v118
    %v312 = vpop.f32.mrf.mxu0
    %v313 = vadd.f32 %v264, %v312
    %v314 = vpop.f32.mrf.mxu0
    %v315 = vadd.f32 %v266, %v314
    %316 = vmatmul.bf16.gmra.mxu0 %v120
    %v317 = vpop.f32.mrf.mxu0
    %v318 = vadd.f32 %v269, %v317
    %v319 = vpop.f32.mrf.mxu0
    %v320 = vadd.f32 %v271, %v319
    %321 = vmatmul.bf16.gmra.mxu0 %v122
    %v322 = vpop.f32.mrf.mxu0
    %v323 = vadd.f32 %v274, %v322
    %v324 = vpop.f32.mrf.mxu0
    %v325 = vadd.f32 %v276, %v324
    %326 = vmatmul.bf16.gmra.mxu0 %v124
    %v327 = vpop.f32.mrf.mxu0
    %v328 = vadd.f32 %v279, %v327
    %v329 = vpop.f32.mrf.mxu0
    %v330 = vadd.f32 %v281, %v329
    %331 = vmatmul.bf16.gmra.mxu0 %v126
    %v332 = vpop.f32.mrf.mxu0
    %v333 = vadd.f32 %v284, %v332
    %v334 = vpop.f32.mrf.mxu0
    %v335 = vadd.f32 %v286, %v334
    %336 = vdwg.mxu0
    %v337 = vld [vmem:[%s2] sm:$0x1]
    %v338 = vperm.slane %v337, 0
    %v339 = vmul.f32 %v298, %v338
    %v340 = vmul.f32 %v300, %v338
    %v341 = vmul.f32 %v303, %v338
    %v342 = vmul.f32 %v305, %v338
    %v343 = vmul.f32 %v308, %v338
    %v344 = vmul.f32 %v310, %v338
    %v345 = vmul.f32 %v313, %v338
    %v346 = vmul.f32 %v315, %v338
    %v347 = vmul.f32 %v318, %v338
    %v348 = vmul.f32 %v320, %v338
    %v349 = vmul.f32 %v323, %v338
    %v350 = vmul.f32 %v325, %v338
    %v351 = vmul.f32 %v328, %v338
    %v352 = vmul.f32 %v330, %v338
    %v353 = vmul.f32 %v333, %v338
    %v354 = vmul.f32 %v335, %v338
    %v355 = vld [vmem:[%s2 + $0x1] sm:$0x1]
    %v356 = vperm.slane %v355, 0
    %v357 = vadd.f32 %v339, %v356
    %v358 = vadd.f32 %v340, %v356
    %v359 = vadd.f32 %v341, %v356
    %v360 = vadd.f32 %v342, %v356
    %v361 = vadd.f32 %v343, %v356
    %v362 = vadd.f32 %v344, %v356
    %v363 = vadd.f32 %v345, %v356
    %v364 = vadd.f32 %v346, %v356
    %v365 = vadd.f32 %v347, %v356
    %v366 = vadd.f32 %v348, %v356
    %v367 = vadd.f32 %v349, %v356
    %v368 = vadd.f32 %v350, %v356
    %v369 = vadd.f32 %v351, %v356
    %v370 = vadd.f32 %v352, %v356
    %v371 = vadd.f32 %v353, %v356
    %v372 = vadd.f32 %v354, %v356
    %v373 = vmax.f32 %v357, 0.0
    %v374 = vmax.f32 %v358, 0.0
    %v375 = vmax.f32 %v359, 0.0
    %v376 = vmax.f32 %v360, 0.0
    %v377 = vmax.f32 %v361, 0.0
    %v378 = vmax.f32 %v362, 0.0
    %v379 = vmax.f32 %v363, 0.0
    %v380 = vmax.f32 %v364, 0.0
    %v381 = vmax.f32 %v365, 0.0
    %v382 = vmax.f32 %v366, 0.0
    %v383 = vmax.f32 %v367, 0.0
    %v384 = vmax.f32 %v368, 0.0
    %v385 = vmax.f32 %v369, 0.0
    %v386 = vmax.f32 %v370, 0.0
    %v387 = vmax.f32 %v371, 0.0
    %v388 = vmax.f32 %v372, 0.0
    %v389 = vpack.c.bf16 %v373, %v373
    %v390 = vpack.c.bf16 %v374, %v374
    %v391 = vpack.c.bf16 %v375, %v375
    %v392 = vpack.c.bf16 %v376, %v376
    %v393 = vpack.c.bf16 %v377, %v377
    %v394 = vpack.c.bf16 %v378, %v378
    %v395 = vpack.c.bf16 %v379, %v379
    %v396 = vpack.c.bf16 %v380, %v380
    %v397 = vpack.c.bf16 %v381, %v381
    %v398 = vpack.c.bf16 %v382, %v382
    %v399 = vpack.c.bf16 %v383, %v383
    %v400 = vpack.c.bf16 %v384, %v384
    %v401 = vpack.c.bf16 %v385, %v385
    %v402 = vpack.c.bf16 %v386, %v386
    %v403 = vpack.c.bf16 %v387, %v387
    %v404 = vpack.c.bf16 %v388, %v388
    %405 = vst [vmem:[#allocation2] sm:$0xf] %v389
    %406 = vst [vmem:[#allocation2 + $0x4] sm:$0xf] %v390
    %407 = vst [vmem:[#allocation2 + $0x8] sm:$0xf] %v391
    %408 = vst [vmem:[#allocation2 + $0xc] sm:$0xf] %v392
    %409 = vst [vmem:[#allocation2 + $0x10] sm:$0xf] %v393
    %410 = vst [vmem:[#allocation2 + $0x14] sm:$0xf] %v394
    %411 = vst [vmem:[#allocation2 + $0x18] sm:$0xf] %v395
    %412 = vst [vmem:[#allocation2 + $0x1c] sm:$0xf] %v396
    %413 = vst [vmem:[#allocation2 + $0x20] sm:$0xf] %v397
    %414 = vst [vmem:[#allocation2 + $0x24] sm:$0xf] %v398
    %415 = vst [vmem:[#allocation2 + $0x28] sm:$0xf] %v399
    %416 = vst [vmem:[#allocation2 + $0x2c] sm:$0xf] %v400
    %417 = vst [vmem:[#allocation2 + $0x30] sm:$0xf] %v401
    %418 = vst [vmem:[#allocation2 + $0x34] sm:$0xf] %v402
    %419 = vst [vmem:[#allocation2 + $0x38] sm:$0xf] %v403
    %420 = vst [vmem:[#allocation2 + $0x3c] sm:$0xf] %v404
    // Predicated region
    $region14: #{conv_im2col.1} parent=1 // pred_check
      _
    $region15: #{conv_im2col.1} parent=1 // pred_check_branch
      %422 = sbr.rel (0) target = $region17
    $region16: #{conv_im2col.1} parent=1 // pred_region
      %424 = vsyncadd [#allocation3], 0
      %s425 = sshll.u32 [#allocation2], 4
      %s426 = int_to_ptr.vmem [resolvable:$true] %s425
      %s427 = sshll.u32 %s3, 4
      %s428 = int_to_ptr.hbm [resolvable:$true] %s427
      %433 = dma.vmem_to_hbm [thread:$0]  %s426, 1024, %s428, [#allocation3], 64, 64, 4
    $region17: #{conv_im2col.1} parent=1 // pred_fallthru
      _
    // Predicated region
    $region18: #{conv_im2col.1} parent=1 // pred_check
      _
    $region19: #{conv_im2col.1} parent=1 // pred_check_branch
      %435 = sbr.rel (0) target = $region21
    $region20: #{conv_im2col.1} parent=1 // pred_region
      %437 = dma.done [#allocation3], 1024
    $region21: #{conv_im2col.1} parent=1 // pred_fallthru
      _
    %438 = vsyncpa [#allocation3], 1

</llo_original>
